<compile_context>
chip_gen: v7x
topology: tpu7x:2x2x1
jax: 0.10.0
libtpu: 0.0.40
codegen_flags: <defaults>
</compile_context>

<pallas_src>
import functools

import jax
import jax.numpy as jnp
from jax.experimental import pallas as pl
from jax.experimental.pallas import tpu as pltpu


def _round_up(x, m):
    return -(-x // m) * m


def _vmem_capacity_bytes():
    # Generation-aware budget: 128 MiB on v5e/v6e, 64 MiB per TensorCore on v7x.
    try:
        return int(pltpu.get_tpu_info().vmem_capacity_bytes)
    except Exception:
        return 64 * 1024 * 1024          # conservative default (v7x per-TC)


def _choose_batch_tile(n, layer_dims, degree, vmem_budget_bytes):
    """Width/degree/VMEM-aware batch tile.

    Caps the tile so per-step live bytes (double-buffered in/out tiles, bf16
    basis scratch, f32 intermediates, resident coefficient blocks) fit the
    budget, and guarantees >=2 grid steps once n >= 16 so the single
    "parallel" batch axis can shard across both v7x TensorCores.
    """
    w_in_max = max(wi for wi, _ in layer_dims)
    w_max = max(max(wi, wo) for wi, wo in layer_dims)
    w0, w_last = layer_dims[0][0], layer_dims[-1][1]
    coeff_bytes = sum((degree - 1) * wi * wo * 2 + wo * 4 for wi, wo in layer_dims)

    def live_bytes(tb):
        io = 2 * tb * (w0 + w_last) * 4                 # double-buffered x/out tiles
        scratch = tb * (degree - 1) * w_in_max * 2      # bf16 basis slab
        inter = 4 * tb * w_max * 4                      # act / tanh / recurrence / dot out (f32)
        return io + scratch + inter + 2 * coeff_bytes   # params counted double-buffered (worst case)

    tb = 8
    for cand in (1024, 512, 256, 128, 64, 32, 16, 8):
        if live_bytes(cand) <= vmem_budget_bytes:
            tb = cand
            break
    if n >= 16:
        tb = min(tb, _round_up(-(-n // 2), 8))          # >=2 grid steps (v7x megacore)
    else:
        tb = min(tb, max(8, _round_up(n, 8)))
    return max(8, tb)


def _invariant_spec(shape, single_buffer):
    """BlockSpec for a grid-invariant operand (constant index_map).

    single_buffer=True requests pipeline_mode=pl.Buffered(1) so the constant
    operand is not needlessly double-buffered in VMEM.
    """
    index_map = lambda i: (0,) * len(shape)
    if single_buffer:
        return pl.BlockSpec(shape, index_map, pipeline_mode=pl.Buffered(1))
    return pl.BlockSpec(shape, index_map)


# ----------------------------------------------------------------------------
# Fused Pallas kernel: the whole FibonacciKAN stack on one batch tile
# ----------------------------------------------------------------------------
def _fib_kan_fused_kernel(x_ref, *refs, degree, layer_dims):
    # x_ref:   (TB, W0) f32 input tile
    # refs:    [coeff_0, bias_0, coeff_1, bias_1, ..., o_ref, basis_scratch]
    #   coeff_l: ((degree-1)*W_in_l, W_out_l) bf16   (F_2..F_degree coefficients)
    #   bias_l : (1, W_out_l) f32                    (folded F_1 contribution)
    #   o_ref  : (TB, W_out_last) f32
    #   basis  : (TB, (degree-1)*max W_in) bf16 VMEM scratch slab
    num_layers = len(layer_dims)
    coeff_refs = refs[0:2 * num_layers:2]
    bias_refs = refs[1:2 * num_layers:2]
    o_ref = refs[2 * num_layers]
    basis_ref = refs[2 * num_layers + 1]

    act = x_ref[...].astype(jnp.float32)
    for l, (w_in, w_out) in enumerate(layer_dims):      # static unroll over layers
        t = jnp.tanh(act)                               # (TB, w_in) f32 on the EUP
        # Fibonacci basis written straight into the bf16 scratch slab.
        # Block j holds F_{j+2}(t): F_0 == 0 is dropped, F_1 == 1 is folded
        # into the per-layer bias, F_2 = t, F_3 = t*t + 1, F_d = t*F_{d-1}+F_{d-2}.
        basis_ref[:, 0:w_in] = t.astype(basis_ref.dtype)
        if degree >= 3:
            f_p, f_c = t, t * t + 1.0
            basis_ref[:, w_in:2 * w_in] = f_c.astype(basis_ref.dtype)
            for d in range(4, degree + 1):
                f_p, f_c = f_c, t * f_c + f_p
                basis_ref[:, (d - 2) * w_in:(d - 1) * w_in] = f_c.astype(basis_ref.dtype)
        k = (degree - 1) * w_in
        # One lane-dense K=(degree-1)*W_in matmul per layer on the MXU
        # (bf16 operands, f32 accumulation) + f32 bias broadcast-add.
        act = jnp.dot(basis_ref[:, :k], coeff_refs[l][...],
                      preferred_element_type=jnp.float32) + bias_refs[l][...]

    o_ref[...] = act.astype(o_ref.dtype)


# ----------------------------------------------------------------------------
# Parameter init + packing + forward
# ----------------------------------------------------------------------------
def init_fibonacci_kan_params(key, layers_hidden, degree):
    """Matches nn.init.normal_(fib_coeffs, mean=0, std=1/(in*(degree+1))).
    Coefficients kept in the PyTorch layout (in, out, degree+1)."""
    params = []
    for in_f, out_f in zip(layers_hidden[:-1], layers_hidden[1:]):
        key, sub = jax.random.split(key)
        std = 1.0 / (in_f * (degree + 1))
        params.append(
            jax.random.normal(sub, (in_f, out_f, degree + 1), jnp.float32) * std)
    return params


def _pack_layer(coeffs, degree, w_in_pad, w_out_pad, mxu_dtype):
    """Pack one layer's torch-layout coeffs (in, out, degree+1) into
      * a ((degree-1)*w_in_pad, w_out_pad) bf16 matmul operand holding the
        F_2..F_degree coefficient blocks (row block d-2 holds F_d), and
      * a (1, w_out_pad) f32 bias = sum_i coeffs[i, :, 1]   (the F_1 == 1 term).
    The F_0 slice is dropped (F_0 == 0); padded rows/cols are zero."""
    in_f, out_f, _ = coeffs.shape
    k = (degree - 1) * w_in_pad
    c = jnp.zeros((k, w_out_pad), jnp.float32)
    for d in range(2, degree + 1):
        r0 = (d - 2) * w_in_pad
        c = c.at[r0:r0 + in_f, :out_f].set(coeffs[:, :, d])
    bias = jnp.zeros((1, w_out_pad), jnp.float32)
    bias = bias.at[0, :out_f].set(jnp.sum(coeffs[:, :, 1], axis=0))
    return c.astype(mxu_dtype), bias


def fibonacci_kan_forward(params, x, layers_hidden, degree,
                          mxu_dtype=jnp.bfloat16):
    in0 = layers_hidden[0]
    out_last = layers_hidden[-1]
    x2 = jnp.reshape(x, (-1, in0)).astype(jnp.float32)
    n = x2.shape[0]

    if degree == 0:
        # F_0(x) == 0 for every input -> every layer (and the net) outputs 0.
        return jnp.zeros((n, out_last), jnp.float32)
    if degree == 1:
        # Basis is [F_0=0, F_1=1]: every layer's output is its constant F_1
        # bias, so the network output is the last layer's bias, independent of x.
        bias = jnp.sum(params[-1][:, :, 1], axis=0)
        return jnp.broadcast_to(bias, (n, out_last)).astype(jnp.float32)

    num_layers = len(layers_hidden) - 1
    # Per-layer lane-dense padded widths (no pad-everything-to-max-width).
    pad_w = [_round_up(w, 128) for w in layers_hidden]
    layer_dims = tuple((pad_w[l], pad_w[l + 1]) for l in range(num_layers))

    coeff_ops, bias_ops = [], []
    for l, c in enumerate(params):
        ck, bk = _pack_layer(c, degree, pad_w[l], pad_w[l + 1], mxu_dtype)
        coeff_ops.append(ck)
        bias_ops.append(bk)

    vmem_cap = _vmem_capacity_bytes()
    tb = _choose_batch_tile(n, layer_dims, degree, int(0.6 * vmem_cap))
    n_pad = _round_up(n, tb)
    w0, w_last = pad_w[0], pad_w[-1]
    k_max = (degree - 1) * max(wi for wi, _ in layer_dims)

    # Only pad to the first layer's own 128-multiple width (lane density),
    # not to the network-wide max width.
    x_pad = jnp.zeros((n_pad, w0), jnp.float32).at[:n, :in0].set(x2)

    kernel = functools.partial(_fib_kan_fused_kernel,
                               degree=degree, layer_dims=layer_dims)

    # Raise the scoped-VMEM limit above the 16/32 MiB v5e/v6e defaults while
    # staying under v7x's 64 MiB physical VMEM.
    vmem_limit = int(min(0.85 * vmem_cap, 112 * 1024 * 1024))

    # TODO(synk): if layer widths ever grow into the many-thousands, tile the
    # Out axis of each coefficient block with an extra "parallel" grid dim
    # instead of keeping whole layers resident in VMEM.
    def run(single_buffer_params):
        in_specs = [pl.BlockSpec((tb, w0), lambda i: (i, 0))]
        args = [x_pad]
        for l in range(num_layers):
            in_specs.append(_invariant_spec(coeff_ops[l].shape, single_buffer_params))
            args.append(coeff_ops[l])
            in_specs.append(_invariant_spec(bias_ops[l].shape, single_buffer_params))
            args.append(bias_ops[l])
        return pl.pallas_call(
            kernel,
            out_shape=jax.ShapeDtypeStruct((n_pad, w_last), jnp.float32),
            grid=(n_pad // tb,),
            in_specs=in_specs,
            out_specs=pl.BlockSpec((tb, w_last), lambda i: (i, 0)),
            scratch_shapes=[pltpu.VMEM((tb, k_max), mxu_dtype)],
            compiler_params=pltpu.CompilerParams(
                dimension_semantics=("parallel",),
                vmem_limit_bytes=vmem_limit),
        )(*args)

    try:
        # Grid-invariant parameter blocks single-buffered (pl.Buffered(1)).
        out = run(True)
    except Exception:
        # Fallback: identical math, parameters simply stay double-buffered on
        # JAX builds that don't lower pipeline_mode for top-level pallas_call.
        out = run(False)

    return out[:n, :out_last]


# ----------------------------------------------------------------------------
# Pure-JAX reference (for verification)
# ----------------------------------------------------------------------------
def _ref_layer(x, coeffs, degree):
    t = jnp.tanh(x)
    fibs = [jnp.zeros_like(t)]                      # F_0 = 0
    if degree >= 1:
        fibs.append(jnp.ones_like(t))               # F_1 = 1
    for d in range(2, degree + 1):
        fibs.append(t * fibs[-1] + fibs[-2])        # F_d = t*F_{d-1} + F_{d-2}
    basis = jnp.stack(fibs, axis=-1)                # (N, In, D+1)
    return jnp.einsum('bid,iod->bo', basis, coeffs)


def _ref_forward(params, x, layers_hidden, degree):
    for in_f, coeffs in zip(layers_hidden[:-1], params):
        x = jnp.reshape(x, (-1, in_f))
        x = _ref_layer(x, coeffs, degree)
    return x


# ----------------------------------------------------------------------------
if __name__ == "__main__":
    layers_hidden = [32, 64, 16]
    degree = 3

    key = jax.random.PRNGKey(0)
    key, pkey, xkey = jax.random.split(key, 3)

    params = init_fibonacci_kan_params(pkey, layers_hidden, degree)

    # Input: (2, 4, 32) -- leading dims get flattened to the batch axis (N=8).
    x = jax.random.normal(xkey, (2, 4, 32), jnp.float32)

    out = fibonacci_kan_forward(params, x, layers_hidden, degree)
    out = jax.block_until_ready(out)

    ref = _ref_forward(params, x, layers_hidden, degree)
    assert out.shape == (8, layers_hidden[-1]), out.shape
    # bf16 MXU operands with f32 accumulation -> allow a small tolerance.
    max_err = float(jnp.max(jnp.abs(out - ref)))
    assert jnp.allclose(out, ref, atol=1e-2, rtol=5e-2), max_err

    print("KERNEL_OK")
</pallas_src>

<mosaic_0001>
module attributes {stable_mosaic.version = 11 : i64} {
  func.func @_fib_kan_fused_kernel(%arg0: i32, %arg1: memref<8x128xf32, #tpu.memory_space<vmem>>, %arg2: memref<256x128xbf16, #tpu.memory_space<vmem>>, %arg3: memref<1x128xf32, #tpu.memory_space<vmem>>, %arg4: memref<256x128xbf16, #tpu.memory_space<vmem>>, %arg5: memref<1x128xf32, #tpu.memory_space<vmem>>, %arg6: memref<8x128xf32, #tpu.memory_space<vmem>>, %arg7: memref<8x256xbf16, #tpu.memory_space<vmem>>) attributes {dimension_semantics = [#tpu.dimension_semantics<parallel>], iteration_bounds = array<i64: 1>, scalar_prefetch = 0 : i64, scratch_operands = 1 : i64, tpu.core_type = #tpu.core_type<tc>, window_params = [{transform_indices = @transform_0, window_bounds = array<i64: 8, 128>}, {pipeline_mode = #tpu.pipeline_mode<synchronous>, transform_indices = @transform_1, window_bounds = array<i64: 256, 128>}, {pipeline_mode = #tpu.pipeline_mode<synchronous>, transform_indices = @transform_2, window_bounds = array<i64: 1, 128>}, {pipeline_mode = #tpu.pipeline_mode<synchronous>, transform_indices = @transform_3, window_bounds = array<i64: 256, 128>}, {pipeline_mode = #tpu.pipeline_mode<synchronous>, transform_indices = @transform_4, window_bounds = array<i64: 1, 128>}, {transform_indices = @transform_5, window_bounds = array<i64: 8, 128>}]} {
    %c0 = arith.constant 0 : index
    %c0_0 = arith.constant 0 : index
    %0 = vector.load %arg1[%c0, %c0_0] : memref<8x128xf32, #tpu.memory_space<vmem>>, vector<8x128xf32>
    %1 = math.tanh %0 : vector<8x128xf32>
    %2 = arith.truncf %1 : vector<8x128xf32> to vector<8x128xbf16>
    %c0_1 = arith.constant 0 : index
    %c0_2 = arith.constant 0 : index
    %3 = vector.load %arg7[%c0_1, %c0_2] : memref<8x256xbf16, #tpu.memory_space<vmem>>, vector<8x128xbf16>
    tpu.vector_store %arg7[%c0_1, %c0_2], %2 {strides = array<i32>} : memref<8x256xbf16, #tpu.memory_space<vmem>>, vector<8x128xbf16>,
    %4 = arith.mulf %1, %1 : vector<8x128xf32>
    %cst = arith.constant 1.000000e+00 : f32
    %5 = vector.broadcast %cst : f32 to vector<8x128xf32>
    %6 = arith.addf %4, %5 : vector<8x128xf32>
    %7 = arith.truncf %6 : vector<8x128xf32> to vector<8x128xbf16>
    %c0_3 = arith.constant 0 : index
    %c128 = arith.constant 128 : index
    %8 = vector.load %arg7[%c0_3, %c128] : memref<8x256xbf16, #tpu.memory_space<vmem>>, vector<8x128xbf16>
    tpu.vector_store %arg7[%c0_3, %c128], %7 {strides = array<i32>} : memref<8x256xbf16, #tpu.memory_space<vmem>>, vector<8x128xbf16>,
    %c0_4 = arith.constant 0 : index
    %c0_5 = arith.constant 0 : index
    %9 = vector.load %arg7[%c0_4, %c0_5] : memref<8x256xbf16, #tpu.memory_space<vmem>>, vector<8x256xbf16>
    %c0_6 = arith.constant 0 : index
    %c0_7 = arith.constant 0 : index
    %10 = vector.load %arg2[%c0_6, %c0_7] : memref<256x128xbf16, #tpu.memory_space<vmem>>, vector<256x128xbf16>
    %cst_8 = arith.constant dense<0.000000e+00> : vector<8x128xf32>
    %11 = tpu.matmul %9, %10, %cst_8 {dimension_numbers = #tpu.dot_dimension_numbers<[1], [0], [0], [1], [0, 0, 1, 1], [], []>} : vector<8x256xbf16>, vector<256x128xbf16>, vector<8x128xf32> -> vector<8x128xf32>
    %c0_9 = arith.constant 0 : index
    %c0_10 = arith.constant 0 : index
    %12 = vector.load %arg3[%c0_9, %c0_10] : memref<1x128xf32, #tpu.memory_space<vmem>>, vector<1x128xf32>
    %13 = vector.broadcast %12 : vector<1x128xf32> to vector<8x128xf32>
    %14 = arith.addf %11, %13 : vector<8x128xf32>
    %15 = math.tanh %14 : vector<8x128xf32>
    %16 = arith.truncf %15 : vector<8x128xf32> to vector<8x128xbf16>
    %c0_11 = arith.constant 0 : index
    %c0_12 = arith.constant 0 : index
    %17 = vector.load %arg7[%c0_11, %c0_12] : memref<8x256xbf16, #tpu.memory_space<vmem>>, vector<8x128xbf16>
    tpu.vector_store %arg7[%c0_11, %c0_12], %16 {strides = array<i32>} : memref<8x256xbf16, #tpu.memory_space<vmem>>, vector<8x128xbf16>,
    %18 = arith.mulf %15, %15 : vector<8x128xf32>
    %cst_13 = arith.constant 1.000000e+00 : f32
    %19 = vector.broadcast %cst_13 : f32 to vector<8x128xf32>
    %20 = arith.addf %18, %19 : vector<8x128xf32>
    %21 = arith.truncf %20 : vector<8x128xf32> to vector<8x128xbf16>
    %c0_14 = arith.constant 0 : index
    %c128_15 = arith.constant 128 : index
    %22 = vector.load %arg7[%c0_14, %c128_15] : memref<8x256xbf16, #tpu.memory_space<vmem>>, vector<8x128xbf16>
    tpu.vector_store %arg7[%c0_14, %c128_15], %21 {strides = array<i32>} : memref<8x256xbf16, #tpu.memory_space<vmem>>, vector<8x128xbf16>,
    %c0_16 = arith.constant 0 : index
    %c0_17 = arith.constant 0 : index
    %23 = vector.load %arg7[%c0_16, %c0_17] : memref<8x256xbf16, #tpu.memory_space<vmem>>, vector<8x256xbf16>
    %c0_18 = arith.constant 0 : index
    %c0_19 = arith.constant 0 : index
    %24 = vector.load %arg4[%c0_18, %c0_19] : memref<256x128xbf16, #tpu.memory_space<vmem>>, vector<256x128xbf16>
    %cst_20 = arith.constant dense<0.000000e+00> : vector<8x128xf32>
    %25 = tpu.matmul %23, %24, %cst_20 {dimension_numbers = #tpu.dot_dimension_numbers<[1], [0], [0], [1], [0, 0, 1, 1], [], []>} : vector<8x256xbf16>, vector<256x128xbf16>, vector<8x128xf32> -> vector<8x128xf32>
    %c0_21 = arith.constant 0 : index
    %c0_22 = arith.constant 0 : index
    %26 = vector.load %arg5[%c0_21, %c0_22] : memref<1x128xf32, #tpu.memory_space<vmem>>, vector<1x128xf32>
    %27 = vector.broadcast %26 : vector<1x128xf32> to vector<8x128xf32>
    %28 = arith.addf %25, %27 : vector<8x128xf32>
    %c0_23 = arith.constant 0 : index
    %c0_24 = arith.constant 0 : index
    %29 = vector.load %arg6[%c0_23, %c0_24] : memref<8x128xf32, #tpu.memory_space<vmem>>, vector<8x128xf32>
    tpu.vector_store %arg6[%c0_23, %c0_24], %28 {strides = array<i32>} : memref<8x128xf32, #tpu.memory_space<vmem>>, vector<8x128xf32>,
    return
  }
  func.func @transform_0(%arg0: i32) -> (i32, i32) {
    %c0_i32 = arith.constant 0 : i32
    %c0_i32_0 = arith.constant 0 : i32
    return %arg0, %c0_i32 : i32, i32
  }
  func.func @transform_1(%arg0: i32) -> (i32, i32) {
    %c0_i32 = arith.constant 0 : i32
    %c0_i32_0 = arith.constant 0 : i32
    %c0_i32_1 = arith.constant 0 : i32
    return %c0_i32, %c0_i32_0 : i32, i32
  }
  func.func @transform_2(%arg0: i32) -> (i32, i32) {
    %c0_i32 = arith.constant 0 : i32
    %c0_i32_0 = arith.constant 0 : i32
    %c0_i32_1 = arith.constant 0 : i32
    return %c0_i32, %c0_i32_0 : i32, i32
  }
  func.func @transform_3(%arg0: i32) -> (i32, i32) {
    %c0_i32 = arith.constant 0 : i32
    %c0_i32_0 = arith.constant 0 : i32
    %c0_i32_1 = arith.constant 0 : i32
    return %c0_i32, %c0_i32_0 : i32, i32
  }
  func.func @transform_4(%arg0: i32) -> (i32, i32) {
    %c0_i32 = arith.constant 0 : i32
    %c0_i32_0 = arith.constant 0 : i32
    %c0_i32_1 = arith.constant 0 : i32
    return %c0_i32, %c0_i32_0 : i32, i32
  }
  func.func @transform_5(%arg0: i32) -> (i32, i32) {
    %c0_i32 = arith.constant 0 : i32
    %c0_i32_0 = arith.constant 0 : i32
    return %arg0, %c0_i32 : i32, i32
  }
}

module attributes {stable_mosaic.version = 11 : i64} {
  func.func @_fib_kan_fused_kernel(%arg0: i32, %arg1: memref<8x128xf32, #tpu.memory_space<vmem>>, %arg2: memref<256x128xbf16, #tpu.memory_space<vmem>>, %arg3: memref<1x128xf32, #tpu.memory_space<vmem>>, %arg4: memref<256x128xbf16, #tpu.memory_space<vmem>>, %arg5: memref<1x128xf32, #tpu.memory_space<vmem>>, %arg6: memref<8x128xf32, #tpu.memory_space<vmem>>, %arg7: memref<8x256xbf16, #tpu.memory_space<vmem>>) attributes {dimension_semantics = [#tpu.dimension_semantics<parallel>], iteration_bounds = array<i64: 1>, scalar_prefetch = 0 : i64, scratch_operands = 1 : i64, tpu.core_type = #tpu.core_type<tc>, window_params = [{transform_indices = @transform_0, window_bounds = array<i64: 8, 128>}, {pipeline_mode = #tpu.pipeline_mode<synchronous>, transform_indices = @transform_1, window_bounds = array<i64: 256, 128>}, {pipeline_mode = #tpu.pipeline_mode<synchronous>, transform_indices = @transform_2, window_bounds = array<i64: 1, 128>}, {pipeline_mode = #tpu.pipeline_mode<synchronous>, transform_indices = @transform_3, window_bounds = array<i64: 256, 128>}, {pipeline_mode = #tpu.pipeline_mode<synchronous>, transform_indices = @transform_4, window_bounds = array<i64: 1, 128>}, {transform_indices = @transform_5, window_bounds = array<i64: 8, 128>}]} {
    %c0 = arith.constant 0 : index
    %c0_0 = arith.constant 0 : index
    %0 = vector.load %arg1[%c0, %c0_0] : memref<8x128xf32, #tpu.memory_space<vmem>>, vector<8x128xf32>
    %1 = math.tanh %0 : vector<8x128xf32>
    %2 = arith.truncf %1 : vector<8x128xf32> to vector<8x128xbf16>
    %c0_1 = arith.constant 0 : index
    %c0_2 = arith.constant 0 : index
    %3 = vector.load %arg7[%c0_1, %c0_2] : memref<8x256xbf16, #tpu.memory_space<vmem>>, vector<8x128xbf16>
    tpu.vector_store %arg7[%c0_1, %c0_2], %2 {strides = array<i32>} : memref<8x256xbf16, #tpu.memory_space<vmem>>, vector<8x128xbf16>,
    %4 = arith.mulf %1, %1 : vector<8x128xf32>
    %cst = arith.constant 1.000000e+00 : f32
    %5 = vector.broadcast %cst : f32 to vector<8x128xf32>
    %6 = arith.addf %4, %5 : vector<8x128xf32>
    %7 = arith.truncf %6 : vector<8x128xf32> to vector<8x128xbf16>
    %c0_3 = arith.constant 0 : index
    %c128 = arith.constant 128 : index
    %8 = vector.load %arg7[%c0_3, %c128] : memref<8x256xbf16, #tpu.memory_space<vmem>>, vector<8x128xbf16>
    tpu.vector_store %arg7[%c0_3, %c128], %7 {strides = array<i32>} : memref<8x256xbf16, #tpu.memory_space<vmem>>, vector<8x128xbf16>,
    %c0_4 = arith.constant 0 : index
    %c0_5 = arith.constant 0 : index
    %9 = vector.load %arg7[%c0_4, %c0_5] : memref<8x256xbf16, #tpu.memory_space<vmem>>, vector<8x256xbf16>
    %c0_6 = arith.constant 0 : index
    %c0_7 = arith.constant 0 : index
    %10 = vector.load %arg2[%c0_6, %c0_7] : memref<256x128xbf16, #tpu.memory_space<vmem>>, vector<256x128xbf16>
    %cst_8 = arith.constant dense<0.000000e+00> : vector<8x128xf32>
    %11 = tpu.matmul %9, %10, %cst_8 {dimension_numbers = #tpu.dot_dimension_numbers<[1], [0], [0], [1], [0, 0, 1, 1], [], []>} : vector<8x256xbf16>, vector<256x128xbf16>, vector<8x128xf32> -> vector<8x128xf32>
    %c0_9 = arith.constant 0 : index
    %c0_10 = arith.constant 0 : index
    %12 = vector.load %arg3[%c0_9, %c0_10] : memref<1x128xf32, #tpu.memory_space<vmem>>, vector<1x128xf32>
    %13 = vector.broadcast %12 : vector<1x128xf32> to vector<8x128xf32>
    %14 = arith.addf %11, %13 : vector<8x128xf32>
    %15 = math.tanh %14 : vector<8x128xf32>
    %16 = arith.truncf %15 : vector<8x128xf32> to vector<8x128xbf16>
    %c0_11 = arith.constant 0 : index
    %c0_12 = arith.constant 0 : index
    %17 = vector.load %arg7[%c0_11, %c0_12] : memref<8x256xbf16, #tpu.memory_space<vmem>>, vector<8x128xbf16>
    tpu.vector_store %arg7[%c0_11, %c0_12], %16 {strides = array<i32>} : memref<8x256xbf16, #tpu.memory_space<vmem>>, vector<8x128xbf16>,
    %18 = arith.mulf %15, %15 : vector<8x128xf32>
    %cst_13 = arith.constant 1.000000e+00 : f32
    %19 = vector.broadcast %cst_13 : f32 to vector<8x128xf32>
    %20 = arith.addf %18, %19 : vector<8x128xf32>
    %21 = arith.truncf %20 : vector<8x128xf32> to vector<8x128xbf16>
    %c0_14 = arith.constant 0 : index
    %c128_15 = arith.constant 128 : index
    %22 = vector.load %arg7[%c0_14, %c128_15] : memref<8x256xbf16, #tpu.memory_space<vmem>>, vector<8x128xbf16>
    tpu.vector_store %arg7[%c0_14, %c128_15], %21 {strides = array<i32>} : memref<8x256xbf16, #tpu.memory_space<vmem>>, vector<8x128xbf16>,
    %c0_16 = arith.constant 0 : index
    %c0_17 = arith.constant 0 : index
    %23 = vector.load %arg7[%c0_16, %c0_17] : memref<8x256xbf16, #tpu.memory_space<vmem>>, vector<8x256xbf16>
    %c0_18 = arith.constant 0 : index
    %c0_19 = arith.constant 0 : index
    %24 = vector.load %arg4[%c0_18, %c0_19] : memref<256x128xbf16, #tpu.memory_space<vmem>>, vector<256x128xbf16>
    %cst_20 = arith.constant dense<0.000000e+00> : vector<8x128xf32>
    %25 = tpu.matmul %23, %24, %cst_20 {dimension_numbers = #tpu.dot_dimension_numbers<[1], [0], [0], [1], [0, 0, 1, 1], [], []>} : vector<8x256xbf16>, vector<256x128xbf16>, vector<8x128xf32> -> vector<8x128xf32>
    %c0_21 = arith.constant 0 : index
    %c0_22 = arith.constant 0 : index
    %26 = vector.load %arg5[%c0_21, %c0_22] : memref<1x128xf32, #tpu.memory_space<vmem>>, vector<1x128xf32>
    %27 = vector.broadcast %26 : vector<1x128xf32> to vector<8x128xf32>
    %28 = arith.addf %25, %27 : vector<8x128xf32>
    %c0_23 = arith.constant 0 : index
    %c0_24 = arith.constant 0 : index
    %29 = vector.load %arg6[%c0_23, %c0_24] : memref<8x128xf32, #tpu.memory_space<vmem>>, vector<8x128xf32>
    tpu.vector_store %arg6[%c0_23, %c0_24], %28 {strides = array<i32>} : memref<8x128xf32, #tpu.memory_space<vmem>>, vector<8x128xf32>,
    return
  }
  func.func @transform_0(%arg0: i32) -> (i32, i32) {
    %c0_i32 = arith.constant 0 : i32
    %c0_i32_0 = arith.constant 0 : i32
    return %arg0, %c0_i32 : i32, i32
  }
  func.func @transform_1(%arg0: i32) -> (i32, i32) {
    %c0_i32 = arith.constant 0 : i32
    %c0_i32_0 = arith.constant 0 : i32
    %c0_i32_1 = arith.constant 0 : i32
    return %c0_i32, %c0_i32_0 : i32, i32
  }
  func.func @transform_2(%arg0: i32) -> (i32, i32) {
    %c0_i32 = arith.constant 0 : i32
    %c0_i32_0 = arith.constant 0 : i32
    %c0_i32_1 = arith.constant 0 : i32
    return %c0_i32, %c0_i32_0 : i32, i32
  }
  func.func @transform_3(%arg0: i32) -> (i32, i32) {
    %c0_i32 = arith.constant 0 : i32
    %c0_i32_0 = arith.constant 0 : i32
    %c0_i32_1 = arith.constant 0 : i32
    return %c0_i32, %c0_i32_0 : i32, i32
  }
  func.func @transform_4(%arg0: i32) -> (i32, i32) {
    %c0_i32 = arith.constant 0 : i32
    %c0_i32_0 = arith.constant 0 : i32
    %c0_i32_1 = arith.constant 0 : i32
    return %c0_i32, %c0_i32_0 : i32, i32
  }
  func.func @transform_5(%arg0: i32) -> (i32, i32) {
    %c0_i32 = arith.constant 0 : i32
    %c0_i32_0 = arith.constant 0 : i32
    return %arg0, %c0_i32 : i32, i32
  }
}

</mosaic_0001>

<llo_original>
// kernel: tpu_custom_call.1
$region0: #{tpu_custom_call.1}
  #allocation0 [shape = 'u32[]', space=smem, size = 0x4, offset = 0x4, fixed_abs, tag = 'smem constant byte address 0x4 - core index']
  #allocation1 [shape = 'u32[144,128]{1,0:T(1,128)}', space=vmem, size = 0x12000, scoped, tag = 'internal scratch']
  #allocation2 [shape = 'bf16[8,256]{1,0:T(8,128)(2,1)}', space=vmem, size = 0x1000, scoped, tag = 'scratch operand']
  %s0 = inlined_call_operand.hbm [shape: f32[8,128], index: 0, kind: input, shape index: {}]
  %s1 = inlined_call_operand.hbm [shape: bf16[256,128], index: 1, kind: input, shape index: {}]
  %s2 = inlined_call_operand.vmem [shape: f32[1,128], index: 2, kind: input, shape index: {}]
  %s3 = inlined_call_operand.hbm [shape: bf16[256,128], index: 3, kind: input, shape index: {}]
  %s4 = inlined_call_operand.vmem [shape: f32[1,128], index: 4, kind: input, shape index: {}]
  %s5 = inlined_call_operand.hbm [shape: f32[8,128], index: 5, kind: output, shape index: {}]
  %s6 = sld [smem:[#allocation0]]
  $region42: #{tpu_custom_call.1} parent=0
    _
  %s8 = ssub.s32 1, %s6
  %s9 = scalar_select 0, %s8, %s6
  $region1: #{tpu_custom_call.1} parent=0
    #allocation3 [shape = 'u8[4096]{0}', space=vmem, size = 0x1000, scoped, tag = 'input window, operand 0, single buffered']
    #allocation4 [shape = 's32[1]{0}', space=sflag, size = 0x4, scoped, tag = 'scoped memory for tpu_custom_call.1']
    #allocation5 [shape = 's32[1]{0}', space=sflag, size = 0x4, scoped, tag = 'scoped memory for tpu_custom_call.1']
    #allocation6 [shape = 'u8[65536]{0}', space=vmem, size = 0x10000, scoped, tag = 'input window, operand 1, single buffered']
    #allocation7 [shape = 's32[1]{0}', space=sflag, size = 0x4, scoped, tag = 'scoped memory for tpu_custom_call.1']
    #allocation8 [shape = 'u8[65536]{0}', space=vmem, size = 0x10000, scoped, tag = 'input window, operand 3, single buffered']
    #allocation9 [shape = 'u8[4096]{0}', space=vmem, size = 0x1000, scoped, tag = 'output window, operand 0, single buffered']
    %10 = vsyncpa [#allocation4], 0
    %11 = vsyncpa [#allocation7], 0
    %12 = vsyncpa [#allocation5], 0
    // Predicated region
    $region2: #{tpu_custom_call.1} parent=1 // pred_check
      _
    $region3: #{tpu_custom_call.1} parent=1 // pred_check_branch
      %14 = sbr.rel (0) target = $region5
    $region4: #{tpu_custom_call.1} parent=1 // pred_region
      %s16 = ssub.s32 128, 128
      %17 = vsyncadd [#allocation4], %s16
      %s19 = sshll.u32 [#allocation3], 4
      %s20 = int_to_ptr.vmem [resolvable:$true] %s19
      %22 = dma.hbm_to_vmem [thread:$0]  %s0, 128, %s20, [#allocation4]
    $region5: #{tpu_custom_call.1} parent=1 // pred_fallthru
      _
    // Predicated region
    $region6: #{tpu_custom_call.1} parent=1 // pred_check
      _
    $region7: #{tpu_custom_call.1} parent=1 // pred_check_branch
      %24 = sbr.rel (0) target = $region9
    $region8: #{tpu_custom_call.1} parent=1 // pred_region
      %s26 = ssub.s32 2048, 2048
      %27 = vsyncadd [#allocation7], %s26
      %s28 = sshll.u32 [#allocation6], 4
      %s29 = int_to_ptr.vmem [resolvable:$true] %s28
      %34 = dma.hbm_to_vmem [thread:$0]  %s1, 2048, %s29, [#allocation7], 64, 64, 4
    $region9: #{tpu_custom_call.1} parent=1 // pred_fallthru
      _
    // Predicated region
    $region10: #{tpu_custom_call.1} parent=1 // pred_check
      _
    $region11: #{tpu_custom_call.1} parent=1 // pred_check_branch
      %36 = sbr.rel (0) target = $region13
    $region12: #{tpu_custom_call.1} parent=1 // pred_region
      _
    $region13: #{tpu_custom_call.1} parent=1 // pred_fallthru
      _
    // Predicated region
    $region14: #{tpu_custom_call.1} parent=1 // pred_check
      _
    $region15: #{tpu_custom_call.1} parent=1 // pred_check_branch
      %38 = sbr.rel (0) target = $region17
    $region16: #{tpu_custom_call.1} parent=1 // pred_region
      %s40 = ssub.s32 2048, 2048
      %41 = vsyncadd [#allocation7], %s40
      %s42 = sshll.u32 [#allocation8], 4
      %s43 = int_to_ptr.vmem [resolvable:$true] %s42
      %48 = dma.hbm_to_vmem [thread:$0]  %s3, 2048, %s43, [#allocation7], 64, 64, 4
    $region17: #{tpu_custom_call.1} parent=1 // pred_fallthru
      _
    // Predicated region
    $region18: #{tpu_custom_call.1} parent=1 // pred_check
      _
    $region19: #{tpu_custom_call.1} parent=1 // pred_check_branch
      %50 = sbr.rel (0) target = $region21
    $region20: #{tpu_custom_call.1} parent=1 // pred_region
      _
    $region21: #{tpu_custom_call.1} parent=1 // pred_fallthru
      _
    // Predicated region
    $region22: #{tpu_custom_call.1} parent=1 // pred_check
      _
    $region23: #{tpu_custom_call.1} parent=1 // pred_check_branch
      %52 = sbr.rel (0) target = $region25
    $region24: #{tpu_custom_call.1} parent=1 // pred_region
      %53 = dma.done [#allocation4], 128
    $region25: #{tpu_custom_call.1} parent=1 // pred_fallthru
      _
    // Predicated region
    $region26: #{tpu_custom_call.1} parent=1 // pred_check
      _
    $region27: #{tpu_custom_call.1} parent=1 // pred_check_branch
      %55 = sbr.rel (0) target = $region29
    $region28: #{tpu_custom_call.1} parent=1 // pred_region
      %56 = dma.done [#allocation7], 2048
    $region29: #{tpu_custom_call.1} parent=1 // pred_fallthru
      _
    // Predicated region
    $region30: #{tpu_custom_call.1} parent=1 // pred_check
      _
    $region31: #{tpu_custom_call.1} parent=1 // pred_check_branch
      %58 = sbr.rel (0) target = $region33
    $region32: #{tpu_custom_call.1} parent=1 // pred_region
      %59 = dma.done [#allocation7], 2048
    $region33: #{tpu_custom_call.1} parent=1 // pred_fallthru
      _
    %v61 = vld [vmem:[#allocation3] sm:$0xff]
    %v62 = vtanh.pop %v61
    %v63 = vpack.c.bf16 %v62, %v62
    %64 = vst [vmem:[#allocation2] sm:$0xf] %v63
    %v65 = vmul.f32 %v62, %v62
    %v66 = vadd.f32 %v65, 1.0
    %v67 = vpack.c.bf16 %v66, %v66
    %68 = vst [vmem:[#allocation2 + $0x4] sm:$0xf] %v67
    %v69 = vld [vmem:[#allocation2] sm:$0xff]
    %v70 = vld [vmem:[#allocation6] sm:$0xf]
    %v71 = vld [vmem:[#allocation6 + $0x4] sm:$0xf]
    %v72 = vld [vmem:[#allocation6 + $0x8] sm:$0xf]
    %v73 = vld [vmem:[#allocation6 + $0xc] sm:$0xf]
    %v74 = vld [vmem:[#allocation6 + $0x10] sm:$0xf]
    %v75 = vld [vmem:[#allocation6 + $0x14] sm:$0xf]
    %v76 = vld [vmem:[#allocation6 + $0x18] sm:$0xf]
    %v77 = vld [vmem:[#allocation6 + $0x1c] sm:$0xf]
    %v78 = vld [vmem:[#allocation6 + $0x20] sm:$0xf]
    %v79 = vld [vmem:[#allocation6 + $0x24] sm:$0xf]
    %v80 = vld [vmem:[#allocation6 + $0x28] sm:$0xf]
    %v81 = vld [vmem:[#allocation6 + $0x2c] sm:$0xf]
    %v82 = vld [vmem:[#allocation6 + $0x30] sm:$0xf]
    %v83 = vld [vmem:[#allocation6 + $0x34] sm:$0xf]
    %v84 = vld [vmem:[#allocation6 + $0x38] sm:$0xf]
    %v85 = vld [vmem:[#allocation6 + $0x3c] sm:$0xf]
    %v86 = vld [vmem:[#allocation6 + $0x40] sm:$0xf]
    %v87 = vld [vmem:[#allocation6 + $0x44] sm:$0xf]
    %v88 = vld [vmem:[#allocation6 + $0x48] sm:$0xf]
    %v89 = vld [vmem:[#allocation6 + $0x4c] sm:$0xf]
    %v90 = vld [vmem:[#allocation6 + $0x50] sm:$0xf]
    %v91 = vld [vmem:[#allocation6 + $0x54] sm:$0xf]
    %v92 = vld [vmem:[#allocation6 + $0x58] sm:$0xf]
    %v93 = vld [vmem:[#allocation6 + $0x5c] sm:$0xf]
    %v94 = vld [vmem:[#allocation6 + $0x60] sm:$0xf]
    %v95 = vld [vmem:[#allocation6 + $0x64] sm:$0xf]
    %v96 = vld [vmem:[#allocation6 + $0x68] sm:$0xf]
    %v97 = vld [vmem:[#allocation6 + $0x6c] sm:$0xf]
    %v98 = vld [vmem:[#allocation6 + $0x70] sm:$0xf]
    %v99 = vld [vmem:[#allocation6 + $0x74] sm:$0xf]
    %v100 = vld [vmem:[#allocation6 + $0x78] sm:$0xf]
    %v101 = vld [vmem:[#allocation6 + $0x7c] sm:$0xf]
    %v102 = vld [vmem:[%s2] sm:$0x1]
    %v104 = vlaneseq
    %v105 = vshrl.u32 %v104, 7
    %v106 = vsub.s32 0, %v105
    %v107 = vrot.slane %v102, %v106
    %v110 = vunpack.c.l.b16 %v69
    %v111 = vunpack.c.h.b16 %v69
    %v112 = vpack.c.b16 %v110, %v110
    %v113 = vpack.c.b16 %v111, %v111
    %v148 = vunpack.c.l.b16 %v70
    %v149 = vunpack.c.l.b16 %v71
    %v150 = vunpack.c.l.b16 %v72
    %v151 = vunpack.c.l.b16 %v73
    %v152 = vunpack.c.l.b16 %v74
    %v153 = vunpack.c.l.b16 %v75
    %v154 = vunpack.c.l.b16 %v76
    %v155 = vunpack.c.l.b16 %v77
    %v156 = vunpack.c.l.b16 %v78
    %v157 = vunpack.c.l.b16 %v79
    %v158 = vunpack.c.l.b16 %v80
    %v159 = vunpack.c.l.b16 %v81
    %v160 = vunpack.c.l.b16 %v82
    %v161 = vunpack.c.l.b16 %v83
    %v162 = vunpack.c.l.b16 %v84
    %v163 = vunpack.c.l.b16 %v85
    %v164 = vunpack.c.l.b16 %v86
    %v165 = vunpack.c.l.b16 %v87
    %v166 = vunpack.c.l.b16 %v88
    %v167 = vunpack.c.l.b16 %v89
    %v168 = vunpack.c.l.b16 %v90
    %v169 = vunpack.c.l.b16 %v91
    %v170 = vunpack.c.l.b16 %v92
    %v171 = vunpack.c.l.b16 %v93
    %v172 = vunpack.c.l.b16 %v94
    %v173 = vunpack.c.l.b16 %v95
    %v174 = vunpack.c.l.b16 %v96
    %v175 = vunpack.c.l.b16 %v97
    %v176 = vunpack.c.l.b16 %v98
    %v177 = vunpack.c.l.b16 %v99
    %v178 = vunpack.c.l.b16 %v100
    %v179 = vunpack.c.l.b16 %v101
    %v180 = vpack.c.b16 %v149, %v148
    %v181 = vpack.c.b16 %v151, %v150
    %v182 = vpack.c.b16 %v153, %v152
    %v183 = vpack.c.b16 %v155, %v154
    %v184 = vpack.c.b16 %v157, %v156
    %v185 = vpack.c.b16 %v159, %v158
    %v186 = vpack.c.b16 %v161, %v160
    %v187 = vpack.c.b16 %v163, %v162
    %v188 = vpack.c.b16 %v165, %v164
    %v189 = vpack.c.b16 %v167, %v166
    %v190 = vpack.c.b16 %v169, %v168
    %v191 = vpack.c.b16 %v171, %v170
    %v192 = vpack.c.b16 %v173, %v172
    %v193 = vpack.c.b16 %v175, %v174
    %v194 = vpack.c.b16 %v177, %v176
    %v195 = vpack.c.b16 %v179, %v178
    %212 = vmatprep.subr.bf16.mxu0 0
    %213 = vmatpush1.bf16.msra.mxu0 %v180
    %214 = vmatprep.subr.bf16.mxu0 0
    %215 = vmatpush1.bf16.msra.mxu0 %v181
    %216 = vmatprep.subr.bf16.mxu0 0
    %217 = vmatpush1.bf16.msra.mxu0 %v182
    %218 = vmatprep.subr.bf16.mxu0 0
    %219 = vmatpush1.bf16.msra.mxu0 %v183
    %220 = vmatprep.subr.bf16.mxu0 0
    %221 = vmatpush1.bf16.msra.mxu0 %v184
    %222 = vmatprep.subr.bf16.mxu0 0
    %223 = vmatpush1.bf16.msra.mxu0 %v185
    %224 = vmatprep.subr.bf16.mxu0 0
    %225 = vmatpush1.bf16.msra.mxu0 %v186
    %226 = vmatprep.subr.bf16.mxu0 0
    %227 = vmatpush1.bf16.msra.mxu0 %v187
    %228 = vmatprep.subr.bf16.mxu0 0
    %229 = vmatpush1.bf16.msra.mxu0 %v188
    %230 = vmatprep.subr.bf16.mxu0 0
    %231 = vmatpush1.bf16.msra.mxu0 %v189
    %232 = vmatprep.subr.bf16.mxu0 0
    %233 = vmatpush1.bf16.msra.mxu0 %v190
    %234 = vmatprep.subr.bf16.mxu0 0
    %235 = vmatpush1.bf16.msra.mxu0 %v191
    %236 = vmatprep.subr.bf16.mxu0 0
    %237 = vmatpush1.bf16.msra.mxu0 %v192
    %238 = vmatprep.subr.bf16.mxu0 0
    %239 = vmatpush1.bf16.msra.mxu0 %v193
    %240 = vmatprep.subr.bf16.mxu0 0
    %241 = vmatpush1.bf16.msra.mxu0 %v194
    %242 = vmatprep.subr.bf16.mxu0 0
    %243 = vmatpush1.bf16.msra.mxu0 %v195
    %244 = vmatprep.mubr.bf16.mxu0 %v113
    %245 = vmatmul.mubr.bf16.gmra.mrb[0].mxu0 %v112
    %v246 = vpop.f32.mrb[0].mxu0
    %v247 = vadd.f32 %v107, %v246
    %v248 = vpop.f32.mrb[0].mxu0
    %v249 = vpop.f32.mrb[0].mxu0
    %v250 = vpop.f32.mrb[0].mxu0
    %251 = vdwg.mxu0
    %v252 = vtanh.pop %v247
    %v253 = vpack.c.bf16 %v252, %v252
    %254 = vst [vmem:[#allocation2] sm:$0xf] %v253
    %v255 = vmul.f32 %v252, %v252
    %v256 = vadd.f32 %v255, 1.0
    %v257 = vpack.c.bf16 %v256, %v256
    %258 = vst [vmem:[#allocation2 + $0x4] sm:$0xf] %v257
    %v259 = vld [vmem:[#allocation2] sm:$0xff]
    %v260 = vld [vmem:[#allocation8] sm:$0xf]
    %v261 = vld [vmem:[#allocation8 + $0x4] sm:$0xf]
    %v262 = vld [vmem:[#allocation8 + $0x8] sm:$0xf]
    %v263 = vld [vmem:[#allocation8 + $0xc] sm:$0xf]
    %v264 = vld [vmem:[#allocation8 + $0x10] sm:$0xf]
    %v265 = vld [vmem:[#allocation8 + $0x14] sm:$0xf]
    %v266 = vld [vmem:[#allocation8 + $0x18] sm:$0xf]
    %v267 = vld [vmem:[#allocation8 + $0x1c] sm:$0xf]
    %v268 = vld [vmem:[#allocation8 + $0x20] sm:$0xf]
    %v269 = vld [vmem:[#allocation8 + $0x24] sm:$0xf]
    %v270 = vld [vmem:[#allocation8 + $0x28] sm:$0xf]
    %v271 = vld [vmem:[#allocation8 + $0x2c] sm:$0xf]
    %v272 = vld [vmem:[#allocation8 + $0x30] sm:$0xf]
    %v273 = vld [vmem:[#allocation8 + $0x34] sm:$0xf]
    %v274 = vld [vmem:[#allocation8 + $0x38] sm:$0xf]
    %v275 = vld [vmem:[#allocation8 + $0x3c] sm:$0xf]
    %v276 = vld [vmem:[#allocation8 + $0x40] sm:$0xf]
    %v277 = vld [vmem:[#allocation8 + $0x44] sm:$0xf]
    %v278 = vld [vmem:[#allocation8 + $0x48] sm:$0xf]
    %v279 = vld [vmem:[#allocation8 + $0x4c] sm:$0xf]
    %v280 = vld [vmem:[#allocation8 + $0x50] sm:$0xf]
    %v281 = vld [vmem:[#allocation8 + $0x54] sm:$0xf]
    %v282 = vld [vmem:[#allocation8 + $0x58] sm:$0xf]
    %v283 = vld [vmem:[#allocation8 + $0x5c] sm:$0xf]
    %v284 = vld [vmem:[#allocation8 + $0x60] sm:$0xf]
    %v285 = vld [vmem:[#allocation8 + $0x64] sm:$0xf]
    %v286 = vld [vmem:[#allocation8 + $0x68] sm:$0xf]
    %v287 = vld [vmem:[#allocation8 + $0x6c] sm:$0xf]
    %v288 = vld [vmem:[#allocation8 + $0x70] sm:$0xf]
    %v289 = vld [vmem:[#allocation8 + $0x74] sm:$0xf]
    %v290 = vld [vmem:[#allocation8 + $0x78] sm:$0xf]
    %v291 = vld [vmem:[#allocation8 + $0x7c] sm:$0xf]
    %v292 = vld [vmem:[%s4] sm:$0x1]
    %v294 = vlaneseq
    %v295 = vshrl.u32 %v294, 7
    %v296 = vsub.s32 0, %v295
    %v297 = vrot.slane %v292, %v296
    %v300 = vunpack.c.l.b16 %v259
    %v301 = vunpack.c.h.b16 %v259
    %v302 = vpack.c.b16 %v300, %v300
    %v303 = vpack.c.b16 %v301, %v301
    %v338 = vunpack.c.l.b16 %v260
    %v339 = vunpack.c.l.b16 %v261
    %v340 = vunpack.c.l.b16 %v262
    %v341 = vunpack.c.l.b16 %v263
    %v342 = vunpack.c.l.b16 %v264
    %v343 = vunpack.c.l.b16 %v265
    %v344 = vunpack.c.l.b16 %v266
    %v345 = vunpack.c.l.b16 %v267
    %v346 = vunpack.c.l.b16 %v268
    %v347 = vunpack.c.l.b16 %v269
    %v348 = vunpack.c.l.b16 %v270
    %v349 = vunpack.c.l.b16 %v271
    %v350 = vunpack.c.l.b16 %v272
    %v351 = vunpack.c.l.b16 %v273
    %v352 = vunpack.c.l.b16 %v274
    %v353 = vunpack.c.l.b16 %v275
    %v354 = vunpack.c.l.b16 %v276
    %v355 = vunpack.c.l.b16 %v277
    %v356 = vunpack.c.l.b16 %v278
    %v357 = vunpack.c.l.b16 %v279
    %v358 = vunpack.c.l.b16 %v280
    %v359 = vunpack.c.l.b16 %v281
    %v360 = vunpack.c.l.b16 %v282
    %v361 = vunpack.c.l.b16 %v283
    %v362 = vunpack.c.l.b16 %v284
    %v363 = vunpack.c.l.b16 %v285
    %v364 = vunpack.c.l.b16 %v286
    %v365 = vunpack.c.l.b16 %v287
    %v366 = vunpack.c.l.b16 %v288
    %v367 = vunpack.c.l.b16 %v289
    %v368 = vunpack.c.l.b16 %v290
    %v369 = vunpack.c.l.b16 %v291
    %v370 = vpack.c.b16 %v339, %v338
    %v371 = vpack.c.b16 %v341, %v340
    %v372 = vpack.c.b16 %v343, %v342
    %v373 = vpack.c.b16 %v345, %v344
    %v374 = vpack.c.b16 %v347, %v346
    %v375 = vpack.c.b16 %v349, %v348
    %v376 = vpack.c.b16 %v351, %v350
    %v377 = vpack.c.b16 %v353, %v352
    %v378 = vpack.c.b16 %v355, %v354
    %v379 = vpack.c.b16 %v357, %v356
    %v380 = vpack.c.b16 %v359, %v358
    %v381 = vpack.c.b16 %v361, %v360
    %v382 = vpack.c.b16 %v363, %v362
    %v383 = vpack.c.b16 %v365, %v364
    %v384 = vpack.c.b16 %v367, %v366
    %v385 = vpack.c.b16 %v369, %v368
    %402 = vmatprep.subr.bf16.mxu0 0
    %403 = vmatpush1.bf16.msra.mxu0 %v370
    %404 = vmatprep.subr.bf16.mxu0 0
    %405 = vmatpush1.bf16.msra.mxu0 %v371
    %406 = vmatprep.subr.bf16.mxu0 0
    %407 = vmatpush1.bf16.msra.mxu0 %v372
    %408 = vmatprep.subr.bf16.mxu0 0
    %409 = vmatpush1.bf16.msra.mxu0 %v373
    %410 = vmatprep.subr.bf16.mxu0 0
    %411 = vmatpush1.bf16.msra.mxu0 %v374
    %412 = vmatprep.subr.bf16.mxu0 0
    %413 = vmatpush1.bf16.msra.mxu0 %v375
    %414 = vmatprep.subr.bf16.mxu0 0
    %415 = vmatpush1.bf16.msra.mxu0 %v376
    %416 = vmatprep.subr.bf16.mxu0 0
    %417 = vmatpush1.bf16.msra.mxu0 %v377
    %418 = vmatprep.subr.bf16.mxu0 0
    %419 = vmatpush1.bf16.msra.mxu0 %v378
    %420 = vmatprep.subr.bf16.mxu0 0
    %421 = vmatpush1.bf16.msra.mxu0 %v379
    %422 = vmatprep.subr.bf16.mxu0 0
    %423 = vmatpush1.bf16.msra.mxu0 %v380
    %424 = vmatprep.subr.bf16.mxu0 0
    %425 = vmatpush1.bf16.msra.mxu0 %v381
    %426 = vmatprep.subr.bf16.mxu0 0
    %427 = vmatpush1.bf16.msra.mxu0 %v382
    %428 = vmatprep.subr.bf16.mxu0 0
    %429 = vmatpush1.bf16.msra.mxu0 %v383
    %430 = vmatprep.subr.bf16.mxu0 0
    %431 = vmatpush1.bf16.msra.mxu0 %v384
    %432 = vmatprep.subr.bf16.mxu0 0
    %433 = vmatpush1.bf16.msra.mxu0 %v385
    %434 = vmatprep.mubr.bf16.mxu0 %v303
    %435 = vmatmul.mubr.bf16.gmra.mrb[0].mxu0 %v302
    %v436 = vpop.f32.mrb[0].mxu0
    %v437 = vadd.f32 %v297, %v436
    %v438 = vpop.f32.mrb[0].mxu0
    %v439 = vpop.f32.mrb[0].mxu0
    %v440 = vpop.f32.mrb[0].mxu0
    %441 = vdwg.mxu0
    %442 = vst [vmem:[#allocation9] sm:$0xff] %v437
    // Predicated region
    $region34: #{tpu_custom_call.1} parent=1 // pred_check
      _
    $region35: #{tpu_custom_call.1} parent=1 // pred_check_branch
      %444 = sbr.rel (0) target = $region37
    $region36: #{tpu_custom_call.1} parent=1 // pred_region
      %s446 = ssub.s32 128, 128
      %447 = vsyncadd [#allocation5], %s446
      %s449 = sshll.u32 [#allocation9], 4
      %s450 = int_to_ptr.vmem [resolvable:$true] %s449
      %452 = dma.vmem_to_hbm [thread:$0]  %s450, 128, %s5, [#allocation5]
    $region37: #{tpu_custom_call.1} parent=1 // pred_fallthru
      _
    // Predicated region
    $region38: #{tpu_custom_call.1} parent=1 // pred_check
      _
    $region39: #{tpu_custom_call.1} parent=1 // pred_check_branch
      %454 = sbr.rel (0) target = $region41
    $region40: #{tpu_custom_call.1} parent=1 // pred_region
      %455 = dma.done [#allocation5], 128
    $region41: #{tpu_custom_call.1} parent=1 // pred_fallthru
      _
    %456 = vsyncpa [#allocation4], 1
    %457 = vsyncpa [#allocation7], 1
    %458 = vsyncpa [#allocation5], 1

// kernel: tpu_custom_call.1
$region0: #{tpu_custom_call.1}
  #allocation0 [shape = 'u32[]', space=smem, size = 0x4, offset = 0x4, fixed_abs, tag = 'smem constant byte address 0x4 - core index']
  #allocation1 [shape = 'u32[144,128]{1,0:T(1,128)}', space=vmem, size = 0x12000, scoped, tag = 'internal scratch']
  #allocation2 [shape = 'bf16[8,256]{1,0:T(8,128)(2,1)}', space=vmem, size = 0x1000, scoped, tag = 'scratch operand']
  %s0 = inlined_call_operand.hbm [shape: f32[8,128], index: 0, kind: input, shape index: {}]
  %s1 = inlined_call_operand.hbm [shape: bf16[256,128], index: 1, kind: input, shape index: {}]
  %s2 = inlined_call_operand.vmem [shape: f32[1,128], index: 2, kind: input, shape index: {}]
  %s3 = inlined_call_operand.hbm [shape: bf16[256,128], index: 3, kind: input, shape index: {}]
  %s4 = inlined_call_operand.vmem [shape: f32[1,128], index: 4, kind: input, shape index: {}]
  %s5 = inlined_call_operand.hbm [shape: f32[8,128], index: 5, kind: output, shape index: {}]
  %s6 = sld [smem:[#allocation0]]
  $region42: #{tpu_custom_call.1} parent=0
    _
  %s8 = ssub.s32 1, %s6
  %s9 = scalar_select 0, %s8, %s6
  $region1: #{tpu_custom_call.1} parent=0
    #allocation3 [shape = 'u8[4096]{0}', space=vmem, size = 0x1000, scoped, tag = 'input window, operand 0, single buffered']
    #allocation4 [shape = 's32[1]{0}', space=sflag, size = 0x4, scoped, tag = 'scoped memory for tpu_custom_call.1']
    #allocation5 [shape = 's32[1]{0}', space=sflag, size = 0x4, scoped, tag = 'scoped memory for tpu_custom_call.1']
    #allocation6 [shape = 'u8[65536]{0}', space=vmem, size = 0x10000, scoped, tag = 'input window, operand 1, single buffered']
    #allocation7 [shape = 's32[1]{0}', space=sflag, size = 0x4, scoped, tag = 'scoped memory for tpu_custom_call.1']
    #allocation8 [shape = 'u8[65536]{0}', space=vmem, size = 0x10000, scoped, tag = 'input window, operand 3, single buffered']
    #allocation9 [shape = 'u8[4096]{0}', space=vmem, size = 0x1000, scoped, tag = 'output window, operand 0, single buffered']
    %10 = vsyncpa [#allocation4], 0
    %11 = vsyncpa [#allocation7], 0
    %12 = vsyncpa [#allocation5], 0
    // Predicated region
    $region2: #{tpu_custom_call.1} parent=1 // pred_check
      _
    $region3: #{tpu_custom_call.1} parent=1 // pred_check_branch
      %14 = sbr.rel (0) target = $region5
    $region4: #{tpu_custom_call.1} parent=1 // pred_region
      %s16 = ssub.s32 128, 128
      %17 = vsyncadd [#allocation4], %s16
      %s19 = sshll.u32 [#allocation3], 4
      %s20 = int_to_ptr.vmem [resolvable:$true] %s19
      %22 = dma.hbm_to_vmem [thread:$0]  %s0, 128, %s20, [#allocation4]
    $region5: #{tpu_custom_call.1} parent=1 // pred_fallthru
      _
    // Predicated region
    $region6: #{tpu_custom_call.1} parent=1 // pred_check
      _
    $region7: #{tpu_custom_call.1} parent=1 // pred_check_branch
      %24 = sbr.rel (0) target = $region9
    $region8: #{tpu_custom_call.1} parent=1 // pred_region
      %s26 = ssub.s32 2048, 2048
      %27 = vsyncadd [#allocation7], %s26
      %s28 = sshll.u32 [#allocation6], 4
      %s29 = int_to_ptr.vmem [resolvable:$true] %s28
      %34 = dma.hbm_to_vmem [thread:$0]  %s1, 2048, %s29, [#allocation7], 64, 64, 4
    $region9: #{tpu_custom_call.1} parent=1 // pred_fallthru
      _
    // Predicated region
    $region10: #{tpu_custom_call.1} parent=1 // pred_check
      _
    $region11: #{tpu_custom_call.1} parent=1 // pred_check_branch
      %36 = sbr.rel (0) target = $region13
    $region12: #{tpu_custom_call.1} parent=1 // pred_region
      _
    $region13: #{tpu_custom_call.1} parent=1 // pred_fallthru
      _
    // Predicated region
    $region14: #{tpu_custom_call.1} parent=1 // pred_check
      _
    $region15: #{tpu_custom_call.1} parent=1 // pred_check_branch
      %38 = sbr.rel (0) target = $region17
    $region16: #{tpu_custom_call.1} parent=1 // pred_region
      %s40 = ssub.s32 2048, 2048
      %41 = vsyncadd [#allocation7], %s40
      %s42 = sshll.u32 [#allocation8], 4
      %s43 = int_to_ptr.vmem [resolvable:$true] %s42
      %48 = dma.hbm_to_vmem [thread:$0]  %s3, 2048, %s43, [#allocation7], 64, 64, 4
    $region17: #{tpu_custom_call.1} parent=1 // pred_fallthru
      _
    // Predicated region
    $region18: #{tpu_custom_call.1} parent=1 // pred_check
      _
    $region19: #{tpu_custom_call.1} parent=1 // pred_check_branch
      %50 = sbr.rel (0) target = $region21
    $region20: #{tpu_custom_call.1} parent=1 // pred_region
      _
    $region21: #{tpu_custom_call.1} parent=1 // pred_fallthru
      _
    // Predicated region
    $region22: #{tpu_custom_call.1} parent=1 // pred_check
      _
    $region23: #{tpu_custom_call.1} parent=1 // pred_check_branch
      %52 = sbr.rel (0) target = $region25
    $region24: #{tpu_custom_call.1} parent=1 // pred_region
      %53 = dma.done [#allocation4], 128
    $region25: #{tpu_custom_call.1} parent=1 // pred_fallthru
      _
    // Predicated region
    $region26: #{tpu_custom_call.1} parent=1 // pred_check
      _
    $region27: #{tpu_custom_call.1} parent=1 // pred_check_branch
      %55 = sbr.rel (0) target = $region29
    $region28: #{tpu_custom_call.1} parent=1 // pred_region
      %56 = dma.done [#allocation7], 2048
    $region29: #{tpu_custom_call.1} parent=1 // pred_fallthru
      _
    // Predicated region
    $region30: #{tpu_custom_call.1} parent=1 // pred_check
      _
    $region31: #{tpu_custom_call.1} parent=1 // pred_check_branch
      %58 = sbr.rel (0) target = $region33
    $region32: #{tpu_custom_call.1} parent=1 // pred_region
      %59 = dma.done [#allocation7], 2048
    $region33: #{tpu_custom_call.1} parent=1 // pred_fallthru
      _
    %v61 = vld [vmem:[#allocation3] sm:$0xff]
    %v62 = vtanh.pop %v61
    %v63 = vpack.c.bf16 %v62, %v62
    %64 = vst [vmem:[#allocation2] sm:$0xf] %v63
    %v65 = vmul.f32 %v62, %v62
    %v66 = vadd.f32 %v65, 1.0
    %v67 = vpack.c.bf16 %v66, %v66
    %68 = vst [vmem:[#allocation2 + $0x4] sm:$0xf] %v67
    %v69 = vld [vmem:[#allocation2] sm:$0xff]
    %v70 = vld [vmem:[#allocation6] sm:$0xf]
    %v71 = vld [vmem:[#allocation6 + $0x4] sm:$0xf]
    %v72 = vld [vmem:[#allocation6 + $0x8] sm:$0xf]
    %v73 = vld [vmem:[#allocation6 + $0xc] sm:$0xf]
    %v74 = vld [vmem:[#allocation6 + $0x10] sm:$0xf]
    %v75 = vld [vmem:[#allocation6 + $0x14] sm:$0xf]
    %v76 = vld [vmem:[#allocation6 + $0x18] sm:$0xf]
    %v77 = vld [vmem:[#allocation6 + $0x1c] sm:$0xf]
    %v78 = vld [vmem:[#allocation6 + $0x20] sm:$0xf]
    %v79 = vld [vmem:[#allocation6 + $0x24] sm:$0xf]
    %v80 = vld [vmem:[#allocation6 + $0x28] sm:$0xf]
    %v81 = vld [vmem:[#allocation6 + $0x2c] sm:$0xf]
    %v82 = vld [vmem:[#allocation6 + $0x30] sm:$0xf]
    %v83 = vld [vmem:[#allocation6 + $0x34] sm:$0xf]
    %v84 = vld [vmem:[#allocation6 + $0x38] sm:$0xf]
    %v85 = vld [vmem:[#allocation6 + $0x3c] sm:$0xf]
    %v86 = vld [vmem:[#allocation6 + $0x40] sm:$0xf]
    %v87 = vld [vmem:[#allocation6 + $0x44] sm:$0xf]
    %v88 = vld [vmem:[#allocation6 + $0x48] sm:$0xf]
    %v89 = vld [vmem:[#allocation6 + $0x4c] sm:$0xf]
    %v90 = vld [vmem:[#allocation6 + $0x50] sm:$0xf]
    %v91 = vld [vmem:[#allocation6 + $0x54] sm:$0xf]
    %v92 = vld [vmem:[#allocation6 + $0x58] sm:$0xf]
    %v93 = vld [vmem:[#allocation6 + $0x5c] sm:$0xf]
    %v94 = vld [vmem:[#allocation6 + $0x60] sm:$0xf]
    %v95 = vld [vmem:[#allocation6 + $0x64] sm:$0xf]
    %v96 = vld [vmem:[#allocation6 + $0x68] sm:$0xf]
    %v97 = vld [vmem:[#allocation6 + $0x6c] sm:$0xf]
    %v98 = vld [vmem:[#allocation6 + $0x70] sm:$0xf]
    %v99 = vld [vmem:[#allocation6 + $0x74] sm:$0xf]
    %v100 = vld [vmem:[#allocation6 + $0x78] sm:$0xf]
    %v101 = vld [vmem:[#allocation6 + $0x7c] sm:$0xf]
    %v102 = vld [vmem:[%s2] sm:$0x1]
    %v104 = vlaneseq
    %v105 = vshrl.u32 %v104, 7
    %v106 = vsub.s32 0, %v105
    %v107 = vrot.slane %v102, %v106
    %v110 = vunpack.c.l.b16 %v69
    %v111 = vunpack.c.h.b16 %v69
    %v112 = vpack.c.b16 %v110, %v110
    %v113 = vpack.c.b16 %v111, %v111
    %v148 = vunpack.c.l.b16 %v70
    %v149 = vunpack.c.l.b16 %v71
    %v150 = vunpack.c.l.b16 %v72
    %v151 = vunpack.c.l.b16 %v73
    %v152 = vunpack.c.l.b16 %v74
    %v153 = vunpack.c.l.b16 %v75
    %v154 = vunpack.c.l.b16 %v76
    %v155 = vunpack.c.l.b16 %v77
    %v156 = vunpack.c.l.b16 %v78
    %v157 = vunpack.c.l.b16 %v79
    %v158 = vunpack.c.l.b16 %v80
    %v159 = vunpack.c.l.b16 %v81
    %v160 = vunpack.c.l.b16 %v82
    %v161 = vunpack.c.l.b16 %v83
    %v162 = vunpack.c.l.b16 %v84
    %v163 = vunpack.c.l.b16 %v85
    %v164 = vunpack.c.l.b16 %v86
    %v165 = vunpack.c.l.b16 %v87
    %v166 = vunpack.c.l.b16 %v88
    %v167 = vunpack.c.l.b16 %v89
    %v168 = vunpack.c.l.b16 %v90
    %v169 = vunpack.c.l.b16 %v91
    %v170 = vunpack.c.l.b16 %v92
    %v171 = vunpack.c.l.b16 %v93
    %v172 = vunpack.c.l.b16 %v94
    %v173 = vunpack.c.l.b16 %v95
    %v174 = vunpack.c.l.b16 %v96
    %v175 = vunpack.c.l.b16 %v97
    %v176 = vunpack.c.l.b16 %v98
    %v177 = vunpack.c.l.b16 %v99
    %v178 = vunpack.c.l.b16 %v100
    %v179 = vunpack.c.l.b16 %v101
    %v180 = vpack.c.b16 %v149, %v148
    %v181 = vpack.c.b16 %v151, %v150
    %v182 = vpack.c.b16 %v153, %v152
    %v183 = vpack.c.b16 %v155, %v154
    %v184 = vpack.c.b16 %v157, %v156
    %v185 = vpack.c.b16 %v159, %v158
    %v186 = vpack.c.b16 %v161, %v160
    %v187 = vpack.c.b16 %v163, %v162
    %v188 = vpack.c.b16 %v165, %v164
    %v189 = vpack.c.b16 %v167, %v166
    %v190 = vpack.c.b16 %v169, %v168
    %v191 = vpack.c.b16 %v171, %v170
    %v192 = vpack.c.b16 %v173, %v172
    %v193 = vpack.c.b16 %v175, %v174
    %v194 = vpack.c.b16 %v177, %v176
    %v195 = vpack.c.b16 %v179, %v178
    %212 = vmatprep.subr.bf16.mxu0 0
    %213 = vmatpush1.bf16.msra.mxu0 %v180
    %214 = vmatprep.subr.bf16.mxu0 0
    %215 = vmatpush1.bf16.msra.mxu0 %v181
    %216 = vmatprep.subr.bf16.mxu0 0
    %217 = vmatpush1.bf16.msra.mxu0 %v182
    %218 = vmatprep.subr.bf16.mxu0 0
    %219 = vmatpush1.bf16.msra.mxu0 %v183
    %220 = vmatprep.subr.bf16.mxu0 0
    %221 = vmatpush1.bf16.msra.mxu0 %v184
    %222 = vmatprep.subr.bf16.mxu0 0
    %223 = vmatpush1.bf16.msra.mxu0 %v185
    %224 = vmatprep.subr.bf16.mxu0 0
    %225 = vmatpush1.bf16.msra.mxu0 %v186
    %226 = vmatprep.subr.bf16.mxu0 0
    %227 = vmatpush1.bf16.msra.mxu0 %v187
    %228 = vmatprep.subr.bf16.mxu0 0
    %229 = vmatpush1.bf16.msra.mxu0 %v188
    %230 = vmatprep.subr.bf16.mxu0 0
    %231 = vmatpush1.bf16.msra.mxu0 %v189
    %232 = vmatprep.subr.bf16.mxu0 0
    %233 = vmatpush1.bf16.msra.mxu0 %v190
    %234 = vmatprep.subr.bf16.mxu0 0
    %235 = vmatpush1.bf16.msra.mxu0 %v191
    %236 = vmatprep.subr.bf16.mxu0 0
    %237 = vmatpush1.bf16.msra.mxu0 %v192
    %238 = vmatprep.subr.bf16.mxu0 0
    %239 = vmatpush1.bf16.msra.mxu0 %v193
    %240 = vmatprep.subr.bf16.mxu0 0
    %241 = vmatpush1.bf16.msra.mxu0 %v194
    %242 = vmatprep.subr.bf16.mxu0 0
    %243 = vmatpush1.bf16.msra.mxu0 %v195
    %244 = vmatprep.mubr.bf16.mxu0 %v113
    %245 = vmatmul.mubr.bf16.gmra.mrb[0].mxu0 %v112
    %v246 = vpop.f32.mrb[0].mxu0
    %v247 = vadd.f32 %v107, %v246
    %v248 = vpop.f32.mrb[0].mxu0
    %v249 = vpop.f32.mrb[0].mxu0
    %v250 = vpop.f32.mrb[0].mxu0
    %251 = vdwg.mxu0
    %v252 = vtanh.pop %v247
    %v253 = vpack.c.bf16 %v252, %v252
    %254 = vst [vmem:[#allocation2] sm:$0xf] %v253
    %v255 = vmul.f32 %v252, %v252
    %v256 = vadd.f32 %v255, 1.0
    %v257 = vpack.c.bf16 %v256, %v256
    %258 = vst [vmem:[#allocation2 + $0x4] sm:$0xf] %v257
    %v259 = vld [vmem:[#allocation2] sm:$0xff]
    %v260 = vld [vmem:[#allocation8] sm:$0xf]
    %v261 = vld [vmem:[#allocation8 + $0x4] sm:$0xf]
    %v262 = vld [vmem:[#allocation8 + $0x8] sm:$0xf]
    %v263 = vld [vmem:[#allocation8 + $0xc] sm:$0xf]
    %v264 = vld [vmem:[#allocation8 + $0x10] sm:$0xf]
    %v265 = vld [vmem:[#allocation8 + $0x14] sm:$0xf]
    %v266 = vld [vmem:[#allocation8 + $0x18] sm:$0xf]
    %v267 = vld [vmem:[#allocation8 + $0x1c] sm:$0xf]
    %v268 = vld [vmem:[#allocation8 + $0x20] sm:$0xf]
    %v269 = vld [vmem:[#allocation8 + $0x24] sm:$0xf]
    %v270 = vld [vmem:[#allocation8 + $0x28] sm:$0xf]
    %v271 = vld [vmem:[#allocation8 + $0x2c] sm:$0xf]
    %v272 = vld [vmem:[#allocation8 + $0x30] sm:$0xf]
    %v273 = vld [vmem:[#allocation8 + $0x34] sm:$0xf]
    %v274 = vld [vmem:[#allocation8 + $0x38] sm:$0xf]
    %v275 = vld [vmem:[#allocation8 + $0x3c] sm:$0xf]
    %v276 = vld [vmem:[#allocation8 + $0x40] sm:$0xf]
    %v277 = vld [vmem:[#allocation8 + $0x44] sm:$0xf]
    %v278 = vld [vmem:[#allocation8 + $0x48] sm:$0xf]
    %v279 = vld [vmem:[#allocation8 + $0x4c] sm:$0xf]
    %v280 = vld [vmem:[#allocation8 + $0x50] sm:$0xf]
    %v281 = vld [vmem:[#allocation8 + $0x54] sm:$0xf]
    %v282 = vld [vmem:[#allocation8 + $0x58] sm:$0xf]
    %v283 = vld [vmem:[#allocation8 + $0x5c] sm:$0xf]
    %v284 = vld [vmem:[#allocation8 + $0x60] sm:$0xf]
    %v285 = vld [vmem:[#allocation8 + $0x64] sm:$0xf]
    %v286 = vld [vmem:[#allocation8 + $0x68] sm:$0xf]
    %v287 = vld [vmem:[#allocation8 + $0x6c] sm:$0xf]
    %v288 = vld [vmem:[#allocation8 + $0x70] sm:$0xf]
    %v289 = vld [vmem:[#allocation8 + $0x74] sm:$0xf]
    %v290 = vld [vmem:[#allocation8 + $0x78] sm:$0xf]
    %v291 = vld [vmem:[#allocation8 + $0x7c] sm:$0xf]
    %v292 = vld [vmem:[%s4] sm:$0x1]
    %v294 = vlaneseq
    %v295 = vshrl.u32 %v294, 7
    %v296 = vsub.s32 0, %v295
    %v297 = vrot.slane %v292, %v296
    %v300 = vunpack.c.l.b16 %v259
    %v301 = vunpack.c.h.b16 %v259
    %v302 = vpack.c.b16 %v300, %v300
    %v303 = vpack.c.b16 %v301, %v301
    %v338 = vunpack.c.l.b16 %v260
    %v339 = vunpack.c.l.b16 %v261
    %v340 = vunpack.c.l.b16 %v262
    %v341 = vunpack.c.l.b16 %v263
    %v342 = vunpack.c.l.b16 %v264
    %v343 = vunpack.c.l.b16 %v265
    %v344 = vunpack.c.l.b16 %v266
    %v345 = vunpack.c.l.b16 %v267
    %v346 = vunpack.c.l.b16 %v268
    %v347 = vunpack.c.l.b16 %v269
    %v348 = vunpack.c.l.b16 %v270
    %v349 = vunpack.c.l.b16 %v271
    %v350 = vunpack.c.l.b16 %v272
    %v351 = vunpack.c.l.b16 %v273
    %v352 = vunpack.c.l.b16 %v274
    %v353 = vunpack.c.l.b16 %v275
    %v354 = vunpack.c.l.b16 %v276
    %v355 = vunpack.c.l.b16 %v277
    %v356 = vunpack.c.l.b16 %v278
    %v357 = vunpack.c.l.b16 %v279
    %v358 = vunpack.c.l.b16 %v280
    %v359 = vunpack.c.l.b16 %v281
    %v360 = vunpack.c.l.b16 %v282
    %v361 = vunpack.c.l.b16 %v283
    %v362 = vunpack.c.l.b16 %v284
    %v363 = vunpack.c.l.b16 %v285
    %v364 = vunpack.c.l.b16 %v286
    %v365 = vunpack.c.l.b16 %v287
    %v366 = vunpack.c.l.b16 %v288
    %v367 = vunpack.c.l.b16 %v289
    %v368 = vunpack.c.l.b16 %v290
    %v369 = vunpack.c.l.b16 %v291
    %v370 = vpack.c.b16 %v339, %v338
    %v371 = vpack.c.b16 %v341, %v340
    %v372 = vpack.c.b16 %v343, %v342
    %v373 = vpack.c.b16 %v345, %v344
    %v374 = vpack.c.b16 %v347, %v346
    %v375 = vpack.c.b16 %v349, %v348
    %v376 = vpack.c.b16 %v351, %v350
    %v377 = vpack.c.b16 %v353, %v352
    %v378 = vpack.c.b16 %v355, %v354
    %v379 = vpack.c.b16 %v357, %v356
    %v380 = vpack.c.b16 %v359, %v358
    %v381 = vpack.c.b16 %v361, %v360
    %v382 = vpack.c.b16 %v363, %v362
    %v383 = vpack.c.b16 %v365, %v364
    %v384 = vpack.c.b16 %v367, %v366
    %v385 = vpack.c.b16 %v369, %v368
    %402 = vmatprep.subr.bf16.mxu0 0
    %403 = vmatpush1.bf16.msra.mxu0 %v370
    %404 = vmatprep.subr.bf16.mxu0 0
    %405 = vmatpush1.bf16.msra.mxu0 %v371
    %406 = vmatprep.subr.bf16.mxu0 0
    %407 = vmatpush1.bf16.msra.mxu0 %v372
    %408 = vmatprep.subr.bf16.mxu0 0
    %409 = vmatpush1.bf16.msra.mxu0 %v373
    %410 = vmatprep.subr.bf16.mxu0 0
    %411 = vmatpush1.bf16.msra.mxu0 %v374
    %412 = vmatprep.subr.bf16.mxu0 0
    %413 = vmatpush1.bf16.msra.mxu0 %v375
    %414 = vmatprep.subr.bf16.mxu0 0
    %415 = vmatpush1.bf16.msra.mxu0 %v376
    %416 = vmatprep.subr.bf16.mxu0 0
    %417 = vmatpush1.bf16.msra.mxu0 %v377
    %418 = vmatprep.subr.bf16.mxu0 0
    %419 = vmatpush1.bf16.msra.mxu0 %v378
    %420 = vmatprep.subr.bf16.mxu0 0
    %421 = vmatpush1.bf16.msra.mxu0 %v379
    %422 = vmatprep.subr.bf16.mxu0 0
    %423 = vmatpush1.bf16.msra.mxu0 %v380
    %424 = vmatprep.subr.bf16.mxu0 0
    %425 = vmatpush1.bf16.msra.mxu0 %v381
    %426 = vmatprep.subr.bf16.mxu0 0
    %427 = vmatpush1.bf16.msra.mxu0 %v382
    %428 = vmatprep.subr.bf16.mxu0 0
    %429 = vmatpush1.bf16.msra.mxu0 %v383
    %430 = vmatprep.subr.bf16.mxu0 0
    %431 = vmatpush1.bf16.msra.mxu0 %v384
    %432 = vmatprep.subr.bf16.mxu0 0
    %433 = vmatpush1.bf16.msra.mxu0 %v385
    %434 = vmatprep.mubr.bf16.mxu0 %v303
    %435 = vmatmul.mubr.bf16.gmra.mrb[0].mxu0 %v302
    %v436 = vpop.f32.mrb[0].mxu0
    %v437 = vadd.f32 %v297, %v436
    %v438 = vpop.f32.mrb[0].mxu0
    %v439 = vpop.f32.mrb[0].mxu0
    %v440 = vpop.f32.mrb[0].mxu0
    %441 = vdwg.mxu0
    %442 = vst [vmem:[#allocation9] sm:$0xff] %v437
    // Predicated region
    $region34: #{tpu_custom_call.1} parent=1 // pred_check
      _
    $region35: #{tpu_custom_call.1} parent=1 // pred_check_branch
      %444 = sbr.rel (0) target = $region37
    $region36: #{tpu_custom_call.1} parent=1 // pred_region
      %s446 = ssub.s32 128, 128
      %447 = vsyncadd [#allocation5], %s446
      %s449 = sshll.u32 [#allocation9], 4
      %s450 = int_to_ptr.vmem [resolvable:$true] %s449
      %452 = dma.vmem_to_hbm [thread:$0]  %s450, 128, %s5, [#allocation5]
    $region37: #{tpu_custom_call.1} parent=1 // pred_fallthru
      _
    // Predicated region
    $region38: #{tpu_custom_call.1} parent=1 // pred_check
      _
    $region39: #{tpu_custom_call.1} parent=1 // pred_check_branch
      %454 = sbr.rel (0) target = $region41
    $region40: #{tpu_custom_call.1} parent=1 // pred_region
      %455 = dma.done [#allocation5], 128
    $region41: #{tpu_custom_call.1} parent=1 // pred_fallthru
      _
    %456 = vsyncpa [#allocation4], 1
    %457 = vsyncpa [#allocation7], 1
    %458 = vsyncpa [#allocation5], 1

</llo_original>
